<compile_context>
chip_gen: v5e
topology: v5e:2x2
jax: 0.10.0
libtpu: 0.0.40
codegen_flags: <defaults>
</compile_context>

<pallas_src>
import jax
import jax.numpy as jnp
from jax.experimental import pallas as pl
from jax.experimental.pallas import tpu as pltpu

# ---- model dims (small, consistent with the module) ----
D_MODEL = 32
NHEAD = 4
HEAD_DIM = D_MODEL // NHEAD
DIM_FF = 64
SEQ = 8
BATCH = 2
LN_EPS = 1e-5
SCALE = float(HEAD_DIM) ** -0.5

SLAB_ORDER = ["wqk", "wv", "wo", "w1", "w2", "rep", "bias", "hm", "bb"]


def _ln(x, g, b):
    """One-pass LayerNorm stats: var = E[x^2] - E[x]^2 (saves an XLU pass)."""
    mu = jnp.mean(x, axis=-1, keepdims=True)
    ms = jnp.mean(x * x, axis=-1, keepdims=True)
    var = ms - mu * mu
    return (x - mu) * jax.lax.rsqrt(var + LN_EPS) * g + b


def encoder_layer_kernel(src_ref, pos_ref, wqk_ref, wv_ref, wo_ref, w1_ref,
                         w2_ref, rep_ref, bias_ref, hm_ref, bb_ref, out_ref):
    E = D_MODEL
    f32, bf16 = jnp.float32, jnp.bfloat16

    src = src_ref[...]                        # (R, E) f32; row r = (l, n), n fastest
    x = src + pos_ref[...]                    # pos-embedded q/k input

    bias = bias_ref[...]                      # (16, 64) f32: biases + LN params
    hm = hm_ref[...]                          # (C, E) f32 0/1 head selector
    rep = rep_ref[...]                        # (C, R) bf16 row replicator

    # ---- in-projection (bf16 operands, f32 accumulation; q-scale pre-folded) ----
    qk = jnp.dot(x.astype(bf16), wqk_ref[...],
                 preferred_element_type=f32) + bias[0:1, :]            # (R, 2E)
    v = jnp.dot(src.astype(bf16), wv_ref[...],
                preferred_element_type=f32) + bias[1:2, :E]            # (R, E)
    q = qk[:, :E]
    k = qk[:, E:]

    # ---- head-replicated, head-masked K / V: replication via a constant
    #      selector matmul (idle MXU), mask is a precomputed 0/1 multiply ----
    krep = jnp.dot(rep, k.astype(bf16), preferred_element_type=f32) * hm   # (C, E)
    vrep = jnp.dot(rep, v.astype(bf16), preferred_element_type=f32) * hm   # (C, E)

    # ---- scores for all heads & batches in one NT matmul + additive batch bias ----
    s = jax.lax.dot_general(q.astype(bf16), krep.astype(bf16),
                            (((1,), (1,)), ((), ())),
                            preferred_element_type=f32)               # (R, C)
    s = s + bb_ref[...]                                               # 0 / -1e30

    # ---- per-(row, head-block) softmax; exp/normalization path stays f32.
    #      Shared row max is >= every block max, a valid stabilizer at these
    #      magnitudes (see review note; revisit if logits grow large). ----
    p = jnp.exp(s - jnp.max(s, axis=-1, keepdims=True))               # (R, C)
    pv = jnp.dot(p.astype(bf16), vrep.astype(bf16),
                 preferred_element_type=f32)                          # (R, E)
    denom = jnp.dot(p, hm, preferred_element_type=f32)                # (R, E) block sums
    attn = pv * pl.reciprocal(denom, approx=True)                     # normalized heads

    # ---- out-projection + residual + LayerNorm1 (dropout == identity, eval) ----
    attn = jnp.dot(attn.astype(bf16), wo_ref[...],
                   preferred_element_type=f32) + bias[2:3, :E]
    y = _ln(src + attn, bias[5:6, :E], bias[6:7, :E])

    # ---- feed-forward: linear1 -> relu -> linear2 ----
    h = jnp.dot(y.astype(bf16), w1_ref[...],
                preferred_element_type=f32) + bias[3:4, :]
    h = jnp.maximum(h, 0.0)
    h = jnp.dot(h.astype(bf16), w2_ref[...],
                preferred_element_type=f32) + bias[4:5, :E]

    # ---- residual + LayerNorm2 ----
    out_ref[...] = _ln(y + h, bias[7:8, :E], bias[8:9, :E])


def transformer_encoder_layer(src, pos, packed):
    """src, pos: (L, N, E) float32 -> (L, N, E) float32. packed: pack_params()."""
    L, N, E = src.shape
    R = L * N
    src_f = src.reshape(R, E)                 # free reshape (leading dims merge)
    pos_f = pos.reshape(R, E)
    slabs = [packed[name] for name in SLAB_ORDER]

    def full_spec(shape):
        return pl.BlockSpec(shape, lambda i: (0, 0))   # all operands are 2-D

    # NOTE: at realistic L*N this should grow a ("parallel",) row-grid axis
    # (v7x 2nd TensorCore) and/or fuse multiple layers per call; at (8,2,32) the
    # whole layer is fixed-overhead bound, so a single grid step is optimal.
    out = pl.pallas_call(
        encoder_layer_kernel,
        out_shape=jax.ShapeDtypeStruct((R, E), jnp.float32),
        grid=(1,),
        in_specs=[full_spec((R, E)), full_spec((R, E))]
        + [full_spec(w.shape) for w in slabs],
        out_specs=full_spec((R, E)),
        compiler_params=pltpu.CompilerParams(
            dimension_semantics=("arbitrary",)),
    )(src_f, pos_f, *slabs)
    return out.reshape(L, N, E)               # free reshape back to (L, N, E)


def init_params(key):
    """Logical (unscaled) parameters; shapes match nn.MultiheadAttention /
    Linear / LayerNorm, stored pre-transposed so the math is x @ W."""
    ks = jax.random.split(key, 8)

    def w(k, shape, scale=0.05):
        return scale * jax.random.normal(k, shape, jnp.float32)

    in_proj_w = w(ks[0], (3 * D_MODEL, D_MODEL))          # like in_proj_weight
    in_proj_b = w(ks[1], (3 * D_MODEL,), 0.02)            # like in_proj_bias
    return dict(
        wq=in_proj_w[0:D_MODEL].T,
        wk=in_proj_w[D_MODEL:2 * D_MODEL].T,
        wv=in_proj_w[2 * D_MODEL:].T,
        bq=in_proj_b[0:D_MODEL].reshape(1, -1),
        bk=in_proj_b[D_MODEL:2 * D_MODEL].reshape(1, -1),
        bv=in_proj_b[2 * D_MODEL:].reshape(1, -1),
        wo=w(ks[2], (D_MODEL, D_MODEL)).T,
        bo=w(ks[3], (D_MODEL,), 0.02).reshape(1, -1),
        g1=jnp.ones((1, D_MODEL), jnp.float32),
        be1=jnp.zeros((1, D_MODEL), jnp.float32),
        w1=w(ks[4], (DIM_FF, D_MODEL)).T,                 # linear1.weight.T
        b1=w(ks[5], (DIM_FF,), 0.02).reshape(1, -1),
        w2=w(ks[6], (D_MODEL, DIM_FF)).T,                 # linear2.weight.T
        b2=w(ks[7], (D_MODEL,), 0.02).reshape(1, -1),
        g2=jnp.ones((1, D_MODEL), jnp.float32),
        be2=jnp.zeros((1, D_MODEL), jnp.float32),
    )


def pack_params(p, seq=SEQ, batch=BATCH):
    """One-time init transform:
       * weights stored bf16 (MXU-native, half the DMA bytes), q-scale folded,
       * biases + LN params stacked into one sublane-aligned f32 slab,
       * every statically-known mask / selector precomputed as a constant slab
         (head selector, batch additive bias, head-replication selector)."""
    R = seq * batch
    C = NHEAD * R
    f32, bf16 = jnp.float32, jnp.bfloat16

    wqk = jnp.concatenate([p["wq"] * SCALE, p["wk"]], axis=1).astype(bf16)  # (E, 2E)
    wv = p["wv"].astype(bf16)                                               # (E, E)
    wo = p["wo"].astype(bf16)                                               # (E, E)
    w1 = p["w1"].astype(bf16)                                               # (E, FF)
    w2 = p["w2"].astype(bf16)                                               # (FF, E)

    # biases / LN params: one f32 slab, one row each (lane-0 aligned slices)
    bias = jnp.zeros((16, 2 * D_MODEL), f32)
    bias = bias.at[0, :].set(jnp.concatenate([p["bq"][0] * SCALE, p["bk"][0]]))
    bias = bias.at[1, :D_MODEL].set(p["bv"][0])
    bias = bias.at[2, :D_MODEL].set(p["bo"][0])
    bias = bias.at[3, :].set(p["b1"][0])
    bias = bias.at[4, :D_MODEL].set(p["b2"][0])
    bias = bias.at[5, :D_MODEL].set(p["g1"][0])
    bias = bias.at[6, :D_MODEL].set(p["be1"][0])
    bias = bias.at[7, :D_MODEL].set(p["g2"][0])
    bias = bias.at[8, :D_MODEL].set(p["be2"][0])

    c = jnp.arange(C)
    e = jnp.arange(D_MODEL)
    r = jnp.arange(R)
    # head selector: hm[c, e] = 1 iff column block (c // R) owns feature e
    hm = ((c[:, None] // R) == (e[None, :] // HEAD_DIM)).astype(f32)        # (C, E)
    # batch restriction as an additive bias (rows/keys interleave the batch)
    bb = jnp.where((r[:, None] % batch) == ((c[None, :] % R) % batch),
                   0.0, -1e30).astype(f32)                                   # (R, C)
    # row replicator: H stacked identities -> rep @ X tiles X over head blocks
    rep = ((c[:, None] % R) == r[None, :]).astype(bf16)                      # (C, R)

    return dict(wqk=wqk, wv=wv, wo=wo, w1=w1, w2=w2,
                rep=rep, bias=bias, hm=hm, bb=bb)


def _layer_norm(x, g, b):
    mu = jnp.mean(x, axis=-1, keepdims=True)
    var = jnp.mean((x - mu) ** 2, axis=-1, keepdims=True)
    return (x - mu) * jax.lax.rsqrt(var + LN_EPS) * g + b


def reference(src, pos, p):
    """Pure-JAX reference mirroring PyTorch eval-mode semantics (f32 highest)."""
    with jax.default_matmul_precision("highest"):
        L, N, E = src.shape
        x = src + pos
        q = jnp.einsum("lne,ef->lnf", x, p["wq"]) + p["bq"][0]
        k = jnp.einsum("lne,ef->lnf", x, p["wk"]) + p["bk"][0]
        v = jnp.einsum("lne,ef->lnf", src, p["wv"]) + p["bv"][0]
        qh = q.reshape(L, N, NHEAD, HEAD_DIM) * SCALE
        kh = k.reshape(L, N, NHEAD, HEAD_DIM)
        vh = v.reshape(L, N, NHEAD, HEAD_DIM)
        s = jnp.einsum("qnhd,knhd->nhqk", qh, kh)
        a = jax.nn.softmax(s, axis=-1)
        o = jnp.einsum("nhqk,knhd->qnhd", a, vh).reshape(L, N, E)
        attn = jnp.einsum("lne,ef->lnf", o, p["wo"]) + p["bo"][0]
        y = _layer_norm(src + attn, p["g1"][0], p["be1"][0])
        h1 = jax.nn.relu(jnp.einsum("lne,ef->lnf", y, p["w1"]) + p["b1"][0])
        h2 = jnp.einsum("lnf,fe->lne", h1, p["w2"]) + p["b2"][0]
        return _layer_norm(y + h2, p["g2"][0], p["be2"][0])


if __name__ == "__main__":
    key = jax.random.PRNGKey(0)
    k_src, k_pos, k_par = jax.random.split(key, 3)
    src = jax.random.normal(k_src, (SEQ, BATCH, D_MODEL), jnp.float32)
    pos = jax.random.normal(k_pos, (SEQ, BATCH, D_MODEL), jnp.float32)
    params = init_params(k_par)
    packed = pack_params(params)              # one-time packing, not per-call

    out = transformer_encoder_layer(src, pos, packed)
    out = jax.block_until_ready(out)

    ref = reference(src, pos, params)
    assert out.shape == (SEQ, BATCH, D_MODEL), out.shape
    max_err = float(jnp.max(jnp.abs(out - ref)))
    assert max_err < 2e-2, f"mismatch vs reference: max abs err {max_err}"
    print("KERNEL_OK")
</pallas_src>

<mosaic_0001>
module attributes {stable_mosaic.version = 11 : i64} {
  func.func @encoder_layer_kernel(%arg0: i32, %arg1: memref<16x32xf32, #tpu.memory_space<vmem>>, %arg2: memref<16x32xf32, #tpu.memory_space<vmem>>, %arg3: memref<32x64xbf16, #tpu.memory_space<vmem>>, %arg4: memref<32x32xbf16, #tpu.memory_space<vmem>>, %arg5: memref<32x32xbf16, #tpu.memory_space<vmem>>, %arg6: memref<32x64xbf16, #tpu.memory_space<vmem>>, %arg7: memref<64x32xbf16, #tpu.memory_space<vmem>>, %arg8: memref<64x16xbf16, #tpu.memory_space<vmem>>, %arg9: memref<16x64xf32, #tpu.memory_space<vmem>>, %arg10: memref<64x32xf32, #tpu.memory_space<vmem>>, %arg11: memref<16x64xf32, #tpu.memory_space<vmem>>, %arg12: memref<16x32xf32, #tpu.memory_space<vmem>>) attributes {dimension_semantics = [#tpu.dimension_semantics<arbitrary>], iteration_bounds = array<i64: 1>, scalar_prefetch = 0 : i64, scratch_operands = 0 : i64, tpu.core_type = #tpu.core_type<tc>, window_params = [{pipeline_mode = #tpu.pipeline_mode<synchronous>, transform_indices = @transform_0, window_bounds = array<i64: 16, 32>}, {pipeline_mode = #tpu.pipeline_mode<synchronous>, transform_indices = @transform_1, window_bounds = array<i64: 16, 32>}, {pipeline_mode = #tpu.pipeline_mode<synchronous>, transform_indices = @transform_2, window_bounds = array<i64: 32, 64>}, {pipeline_mode = #tpu.pipeline_mode<synchronous>, transform_indices = @transform_3, window_bounds = array<i64: 32, 32>}, {pipeline_mode = #tpu.pipeline_mode<synchronous>, transform_indices = @transform_4, window_bounds = array<i64: 32, 32>}, {pipeline_mode = #tpu.pipeline_mode<synchronous>, transform_indices = @transform_5, window_bounds = array<i64: 32, 64>}, {pipeline_mode = #tpu.pipeline_mode<synchronous>, transform_indices = @transform_6, window_bounds = array<i64: 64, 32>}, {pipeline_mode = #tpu.pipeline_mode<synchronous>, transform_indices = @transform_7, window_bounds = array<i64: 64, 16>}, {pipeline_mode = #tpu.pipeline_mode<synchronous>, transform_indices = @transform_8, window_bounds = array<i64: 16, 64>}, {pipeline_mode = #tpu.pipeline_mode<synchronous>, transform_indices = @transform_9, window_bounds = array<i64: 64, 32>}, {pipeline_mode = #tpu.pipeline_mode<synchronous>, transform_indices = @transform_10, window_bounds = array<i64: 16, 64>}, {pipeline_mode = #tpu.pipeline_mode<synchronous>, transform_indices = @transform_11, window_bounds = array<i64: 16, 32>}]} {
    %c0 = arith.constant 0 : index
    %c0_0 = arith.constant 0 : index
    %0 = vector.load %arg1[%c0, %c0_0] : memref<16x32xf32, #tpu.memory_space<vmem>>, vector<16x32xf32>
    %c0_1 = arith.constant 0 : index
    %c0_2 = arith.constant 0 : index
    %1 = vector.load %arg2[%c0_1, %c0_2] : memref<16x32xf32, #tpu.memory_space<vmem>>, vector<16x32xf32>
    %2 = arith.addf %0, %1 : vector<16x32xf32>
    %c0_3 = arith.constant 0 : index
    %c0_4 = arith.constant 0 : index
    %3 = vector.load %arg9[%c0_3, %c0_4] : memref<16x64xf32, #tpu.memory_space<vmem>>, vector<16x64xf32>
    %c0_5 = arith.constant 0 : index
    %c0_6 = arith.constant 0 : index
    %4 = vector.load %arg10[%c0_5, %c0_6] : memref<64x32xf32, #tpu.memory_space<vmem>>, vector<64x32xf32>
    %c0_7 = arith.constant 0 : index
    %c0_8 = arith.constant 0 : index
    %5 = vector.load %arg8[%c0_7, %c0_8] : memref<64x16xbf16, #tpu.memory_space<vmem>>, vector<64x16xbf16>
    %6 = arith.truncf %2 : vector<16x32xf32> to vector<16x32xbf16>
    %c0_9 = arith.constant 0 : index
    %c0_10 = arith.constant 0 : index
    %7 = vector.load %arg3[%c0_9, %c0_10] : memref<32x64xbf16, #tpu.memory_space<vmem>>, vector<32x64xbf16>
    %cst = arith.constant dense<0.000000e+00> : vector<16x64xf32>
    %8 = tpu.matmul %6, %7, %cst {dimension_numbers = #tpu.dot_dimension_numbers<[1], [0], [0], [1], [0, 0, 1, 1], [], []>} : vector<16x32xbf16>, vector<32x64xbf16>, vector<16x64xf32> -> vector<16x64xf32>
    %9 = vector.extract_strided_slice %3 {offsets = [0, 0], sizes = [1, 64], strides = [1, 1]} : vector<16x64xf32> to vector<1x64xf32>
    %10 = vector.broadcast %9 : vector<1x64xf32> to vector<16x64xf32>
    %11 = arith.addf %8, %10 : vector<16x64xf32>
    %12 = arith.truncf %0 : vector<16x32xf32> to vector<16x32xbf16>
    %c0_11 = arith.constant 0 : index
    %c0_12 = arith.constant 0 : index
    %13 = vector.load %arg4[%c0_11, %c0_12] : memref<32x32xbf16, #tpu.memory_space<vmem>>, vector<32x32xbf16>
    %cst_13 = arith.constant dense<0.000000e+00> : vector<16x32xf32>
    %14 = tpu.matmul %12, %13, %cst_13 {dimension_numbers = #tpu.dot_dimension_numbers<[1], [0], [0], [1], [0, 0, 1, 1], [], []>} : vector<16x32xbf16>, vector<32x32xbf16>, vector<16x32xf32> -> vector<16x32xf32>
    %15 = vector.extract_strided_slice %3 {offsets = [1, 0], sizes = [1, 32], strides = [1, 1]} : vector<16x64xf32> to vector<1x32xf32>
    %16 = vector.broadcast %15 : vector<1x32xf32> to vector<16x32xf32>
    %17 = arith.addf %14, %16 : vector<16x32xf32>
    %18 = vector.extract_strided_slice %11 {offsets = [0, 0], sizes = [16, 32], strides = [1, 1]} : vector<16x64xf32> to vector<16x32xf32>
    %19 = vector.extract_strided_slice %11 {offsets = [0, 32], sizes = [16, 32], strides = [1, 1]} : vector<16x64xf32> to vector<16x32xf32>
    %20 = arith.truncf %19 : vector<16x32xf32> to vector<16x32xbf16>
    %cst_14 = arith.constant dense<0.000000e+00> : vector<64x32xf32>
    %21 = tpu.matmul %5, %20, %cst_14 {dimension_numbers = #tpu.dot_dimension_numbers<[1], [0], [0], [1], [0, 0, 1, 1], [], []>} : vector<64x16xbf16>, vector<16x32xbf16>, vector<64x32xf32> -> vector<64x32xf32>
    %22 = arith.mulf %21, %4 : vector<64x32xf32>
    %23 = arith.truncf %17 : vector<16x32xf32> to vector<16x32xbf16>
    %cst_15 = arith.constant dense<0.000000e+00> : vector<64x32xf32>
    %24 = tpu.matmul %5, %23, %cst_15 {dimension_numbers = #tpu.dot_dimension_numbers<[1], [0], [0], [1], [0, 0, 1, 1], [], []>} : vector<64x16xbf16>, vector<16x32xbf16>, vector<64x32xf32> -> vector<64x32xf32>
    %25 = arith.mulf %24, %4 : vector<64x32xf32>
    %26 = arith.truncf %18 : vector<16x32xf32> to vector<16x32xbf16>
    %27 = arith.truncf %22 : vector<64x32xf32> to vector<64x32xbf16>
    %cst_16 = arith.constant dense<0.000000e+00> : vector<16x64xf32>
    %28 = tpu.matmul %26, %27, %cst_16 {dimension_numbers = #tpu.dot_dimension_numbers<[1], [1], [0], [0], [0, 0, 1, 0], [], []>} : vector<16x32xbf16>, vector<64x32xbf16>, vector<16x64xf32> -> vector<16x64xf32>
    %c0_17 = arith.constant 0 : index
    %c0_18 = arith.constant 0 : index
    %29 = vector.load %arg11[%c0_17, %c0_18] : memref<16x64xf32, #tpu.memory_space<vmem>>, vector<16x64xf32>
    %30 = arith.addf %28, %29 : vector<16x64xf32>
    %cst_19 = arith.constant dense<0xFF800000> : vector<16xf32>
    %31 = vector.multi_reduction <maximumf>, %30, %cst_19 [1] : vector<16x64xf32> to vector<16xf32>
    %32 = vector.shape_cast %31 : vector<16xf32> to vector<16x1xf32>
    %33 = vector.broadcast %32 : vector<16x1xf32> to vector<16x64xf32>
    %34 = arith.subf %30, %33 : vector<16x64xf32>
    %35 = math.exp %34 : vector<16x64xf32>
    %36 = arith.truncf %35 : vector<16x64xf32> to vector<16x64xbf16>
    %37 = arith.truncf %25 : vector<64x32xf32> to vector<64x32xbf16>
    %cst_20 = arith.constant dense<0.000000e+00> : vector<16x32xf32>
    %38 = tpu.matmul %36, %37, %cst_20 {dimension_numbers = #tpu.dot_dimension_numbers<[1], [0], [0], [1], [0, 0, 1, 1], [], []>} : vector<16x64xbf16>, vector<64x32xbf16>, vector<16x32xf32> -> vector<16x32xf32>
    %cst_21 = arith.constant dense<0.000000e+00> : vector<16x32xf32>
    %39 = tpu.matmul %35, %4, %cst_21 {dimension_numbers = #tpu.dot_dimension_numbers<[1], [0], [0], [1], [0, 0, 1, 1], [], []>} : vector<16x64xf32>, vector<64x32xf32>, vector<16x32xf32> -> vector<16x32xf32>
    %40 = tpu.reciprocal %39 {approx = true} : vector<16x32xf32> -> vector<16x32xf32>
    %41 = arith.mulf %38, %40 : vector<16x32xf32>
    %42 = arith.truncf %41 : vector<16x32xf32> to vector<16x32xbf16>
    %c0_22 = arith.constant 0 : index
    %c0_23 = arith.constant 0 : index
    %43 = vector.load %arg5[%c0_22, %c0_23] : memref<32x32xbf16, #tpu.memory_space<vmem>>, vector<32x32xbf16>
    %cst_24 = arith.constant dense<0.000000e+00> : vector<16x32xf32>
    %44 = tpu.matmul %42, %43, %cst_24 {dimension_numbers = #tpu.dot_dimension_numbers<[1], [0], [0], [1], [0, 0, 1, 1], [], []>} : vector<16x32xbf16>, vector<32x32xbf16>, vector<16x32xf32> -> vector<16x32xf32>
    %45 = vector.extract_strided_slice %3 {offsets = [2, 0], sizes = [1, 32], strides = [1, 1]} : vector<16x64xf32> to vector<1x32xf32>
    %46 = vector.broadcast %45 : vector<1x32xf32> to vector<16x32xf32>
    %47 = arith.addf %44, %46 : vector<16x32xf32>
    %48 = arith.addf %0, %47 : vector<16x32xf32>
    %49 = vector.extract_strided_slice %3 {offsets = [5, 0], sizes = [1, 32], strides = [1, 1]} : vector<16x64xf32> to vector<1x32xf32>
    %50 = vector.extract_strided_slice %3 {offsets = [6, 0], sizes = [1, 32], strides = [1, 1]} : vector<16x64xf32> to vector<1x32xf32>
    %cst_25 = arith.constant dense<0.000000e+00> : vector<16xf32>
    %51 = vector.multi_reduction <add>, %48, %cst_25 [1] : vector<16x32xf32> to vector<16xf32>
    %52 = vector.shape_cast %51 : vector<16xf32> to vector<16x1xf32>
    %cst_26 = arith.constant 3.200000e+01 : f32
    %53 = vector.broadcast %cst_26 : f32 to vector<16x1xf32>
    %54 = arith.divf %52, %53 : vector<16x1xf32>
    %55 = arith.mulf %48, %48 : vector<16x32xf32>
    %cst_27 = arith.constant dense<0.000000e+00> : vector<16xf32>
    %56 = vector.multi_reduction <add>, %55, %cst_27 [1] : vector<16x32xf32> to vector<16xf32>
    %57 = vector.shape_cast %56 : vector<16xf32> to vector<16x1xf32>
    %cst_28 = arith.constant 3.200000e+01 : f32
    %58 = vector.broadcast %cst_28 : f32 to vector<16x1xf32>
    %59 = arith.divf %57, %58 : vector<16x1xf32>
    %60 = arith.mulf %54, %54 : vector<16x1xf32>
    %61 = arith.subf %59, %60 : vector<16x1xf32>
    %62 = vector.broadcast %54 : vector<16x1xf32> to vector<16x32xf32>
    %63 = arith.subf %48, %62 : vector<16x32xf32>
    %cst_29 = arith.constant 9.99999974E-6 : f32
    %64 = vector.broadcast %cst_29 : f32 to vector<16x1xf32>
    %65 = arith.addf %61, %64 : vector<16x1xf32>
    %66 = math.rsqrt %65 : vector<16x1xf32>
    %67 = vector.broadcast %66 : vector<16x1xf32> to vector<16x32xf32>
    %68 = arith.mulf %63, %67 : vector<16x32xf32>
    %69 = vector.broadcast %49 : vector<1x32xf32> to vector<16x32xf32>
    %70 = arith.mulf %68, %69 : vector<16x32xf32>
    %71 = vector.broadcast %50 : vector<1x32xf32> to vector<16x32xf32>
    %72 = arith.addf %70, %71 : vector<16x32xf32>
    %73 = arith.truncf %72 : vector<16x32xf32> to vector<16x32xbf16>
    %c0_30 = arith.constant 0 : index
    %c0_31 = arith.constant 0 : index
    %74 = vector.load %arg6[%c0_30, %c0_31] : memref<32x64xbf16, #tpu.memory_space<vmem>>, vector<32x64xbf16>
    %cst_32 = arith.constant dense<0.000000e+00> : vector<16x64xf32>
    %75 = tpu.matmul %73, %74, %cst_32 {dimension_numbers = #tpu.dot_dimension_numbers<[1], [0], [0], [1], [0, 0, 1, 1], [], []>} : vector<16x32xbf16>, vector<32x64xbf16>, vector<16x64xf32> -> vector<16x64xf32>
    %76 = vector.extract_strided_slice %3 {offsets = [3, 0], sizes = [1, 64], strides = [1, 1]} : vector<16x64xf32> to vector<1x64xf32>
    %77 = vector.broadcast %76 : vector<1x64xf32> to vector<16x64xf32>
    %78 = arith.addf %75, %77 : vector<16x64xf32>
    %cst_33 = arith.constant 0.000000e+00 : f32
    %79 = vector.broadcast %cst_33 : f32 to vector<16x64xf32>
    %80 = arith.maximumf %78, %79 : vector<16x64xf32>
    %81 = arith.truncf %80 : vector<16x64xf32> to vector<16x64xbf16>
    %c0_34 = arith.constant 0 : index
    %c0_35 = arith.constant 0 : index
    %82 = vector.load %arg7[%c0_34, %c0_35] : memref<64x32xbf16, #tpu.memory_space<vmem>>, vector<64x32xbf16>
    %cst_36 = arith.constant dense<0.000000e+00> : vector<16x32xf32>
    %83 = tpu.matmul %81, %82, %cst_36 {dimension_numbers = #tpu.dot_dimension_numbers<[1], [0], [0], [1], [0, 0, 1, 1], [], []>} : vector<16x64xbf16>, vector<64x32xbf16>, vector<16x32xf32> -> vector<16x32xf32>
    %84 = vector.extract_strided_slice %3 {offsets = [4, 0], sizes = [1, 32], strides = [1, 1]} : vector<16x64xf32> to vector<1x32xf32>
    %85 = vector.broadcast %84 : vector<1x32xf32> to vector<16x32xf32>
    %86 = arith.addf %83, %85 : vector<16x32xf32>
    %87 = arith.addf %72, %86 : vector<16x32xf32>
    %88 = vector.extract_strided_slice %3 {offsets = [7, 0], sizes = [1, 32], strides = [1, 1]} : vector<16x64xf32> to vector<1x32xf32>
    %89 = vector.extract_strided_slice %3 {offsets = [8, 0], sizes = [1, 32], strides = [1, 1]} : vector<16x64xf32> to vector<1x32xf32>
    %cst_37 = arith.constant dense<0.000000e+00> : vector<16xf32>
    %90 = vector.multi_reduction <add>, %87, %cst_37 [1] : vector<16x32xf32> to vector<16xf32>
    %91 = vector.shape_cast %90 : vector<16xf32> to vector<16x1xf32>
    %cst_38 = arith.constant 3.200000e+01 : f32
    %92 = vector.broadcast %cst_38 : f32 to vector<16x1xf32>
    %93 = arith.divf %91, %92 : vector<16x1xf32>
    %94 = arith.mulf %87, %87 : vector<16x32xf32>
    %cst_39 = arith.constant dense<0.000000e+00> : vector<16xf32>
    %95 = vector.multi_reduction <add>, %94, %cst_39 [1] : vector<16x32xf32> to vector<16xf32>
    %96 = vector.shape_cast %95 : vector<16xf32> to vector<16x1xf32>
    %cst_40 = arith.constant 3.200000e+01 : f32
    %97 = vector.broadcast %cst_40 : f32 to vector<16x1xf32>
    %98 = arith.divf %96, %97 : vector<16x1xf32>
    %99 = arith.mulf %93, %93 : vector<16x1xf32>
    %100 = arith.subf %98, %99 : vector<16x1xf32>
    %101 = vector.broadcast %93 : vector<16x1xf32> to vector<16x32xf32>
    %102 = arith.subf %87, %101 : vector<16x32xf32>
    %cst_41 = arith.constant 9.99999974E-6 : f32
    %103 = vector.broadcast %cst_41 : f32 to vector<16x1xf32>
    %104 = arith.addf %100, %103 : vector<16x1xf32>
    %105 = math.rsqrt %104 : vector<16x1xf32>
    %106 = vector.broadcast %105 : vector<16x1xf32> to vector<16x32xf32>
    %107 = arith.mulf %102, %106 : vector<16x32xf32>
    %108 = vector.broadcast %88 : vector<1x32xf32> to vector<16x32xf32>
    %109 = arith.mulf %107, %108 : vector<16x32xf32>
    %110 = vector.broadcast %89 : vector<1x32xf32> to vector<16x32xf32>
    %111 = arith.addf %109, %110 : vector<16x32xf32>
    %c0_42 = arith.constant 0 : index
    %c0_43 = arith.constant 0 : index
    %112 = vector.load %arg12[%c0_42, %c0_43] : memref<16x32xf32, #tpu.memory_space<vmem>>, vector<16x32xf32>
    tpu.vector_store %arg12[%c0_42, %c0_43], %111 {strides = array<i32>} : memref<16x32xf32, #tpu.memory_space<vmem>>, vector<16x32xf32>,
    return
  }
  func.func @transform_0(%arg0: i32) -> (i32, i32) {
    %c0_i32 = arith.constant 0 : i32
    %c0_i32_0 = arith.constant 0 : i32
    %c0_i32_1 = arith.constant 0 : i32
    return %c0_i32, %c0_i32_0 : i32, i32
  }
  func.func @transform_1(%arg0: i32) -> (i32, i32) {
    %c0_i32 = arith.constant 0 : i32
    %c0_i32_0 = arith.constant 0 : i32
    %c0_i32_1 = arith.constant 0 : i32
    return %c0_i32, %c0_i32_0 : i32, i32
  }
  func.func @transform_2(%arg0: i32) -> (i32, i32) {
    %c0_i32 = arith.constant 0 : i32
    %c0_i32_0 = arith.constant 0 : i32
    %c0_i32_1 = arith.constant 0 : i32
    return %c0_i32, %c0_i32_0 : i32, i32
  }
  func.func @transform_3(%arg0: i32) -> (i32, i32) {
    %c0_i32 = arith.constant 0 : i32
    %c0_i32_0 = arith.constant 0 : i32
    %c0_i32_1 = arith.constant 0 : i32
    return %c0_i32, %c0_i32_0 : i32, i32
  }
  func.func @transform_4(%arg0: i32) -> (i32, i32) {
    %c0_i32 = arith.constant 0 : i32
    %c0_i32_0 = arith.constant 0 : i32
    %c0_i32_1 = arith.constant 0 : i32
    return %c0_i32, %c0_i32_0 : i32, i32
  }
  func.func @transform_5(%arg0: i32) -> (i32, i32) {
    %c0_i32 = arith.constant 0 : i32
    %c0_i32_0 = arith.constant 0 : i32
    %c0_i32_1 = arith.constant 0 : i32
    return %c0_i32, %c0_i32_0 : i32, i32
  }
  func.func @transform_6(%arg0: i32) -> (i32, i32) {
    %c0_i32 = arith.constant 0 : i32
    %c0_i32_0 = arith.constant 0 : i32
    %c0_i32_1 = arith.constant 0 : i32
    return %c0_i32, %c0_i32_0 : i32, i32
  }
  func.func @transform_7(%arg0: i32) -> (i32, i32) {
    %c0_i32 = arith.constant 0 : i32
    %c0_i32_0 = arith.constant 0 : i32
    %c0_i32_1 = arith.constant 0 : i32
    return %c0_i32, %c0_i32_0 : i32, i32
  }
  func.func @transform_8(%arg0: i32) -> (i32, i32) {
    %c0_i32 = arith.constant 0 : i32
    %c0_i32_0 = arith.constant 0 : i32
    %c0_i32_1 = arith.constant 0 : i32
    return %c0_i32, %c0_i32_0 : i32, i32
  }
  func.func @transform_9(%arg0: i32) -> (i32, i32) {
    %c0_i32 = arith.constant 0 : i32
    %c0_i32_0 = arith.constant 0 : i32
    %c0_i32_1 = arith.constant 0 : i32
    return %c0_i32, %c0_i32_0 : i32, i32
  }
  func.func @transform_10(%arg0: i32) -> (i32, i32) {
    %c0_i32 = arith.constant 0 : i32
    %c0_i32_0 = arith.constant 0 : i32
    %c0_i32_1 = arith.constant 0 : i32
    return %c0_i32, %c0_i32_0 : i32, i32
  }
  func.func @transform_11(%arg0: i32) -> (i32, i32) {
    %c0_i32 = arith.constant 0 : i32
    %c0_i32_0 = arith.constant 0 : i32
    %c0_i32_1 = arith.constant 0 : i32
    return %c0_i32, %c0_i32_0 : i32, i32
  }
}

</mosaic_0001>

<llo_original>
// kernel: tpu_custom_call.1
$region0: #{tpu_custom_call.1}
  #allocation0 [shape = 'u32[]', space=smem, size = 0x4, offset = 0x4, fixed_abs, tag = 'smem constant byte address 0x4 - core index']
  #allocation1 [shape = 'u32[72,128]{1,0:T(1,128)}', space=vmem, size = 0x9000, scoped, tag = 'internal scratch']
  %s0 = inlined_call_operand.vmem [shape: f32[16,32], index: 0, kind: input, shape index: {}]
  %s1 = inlined_call_operand.vmem [shape: f32[16,32], index: 1, kind: input, shape index: {}]
  %s2 = inlined_call_operand.vmem [shape: bf16[32,64], index: 2, kind: input, shape index: {}]
  %s3 = inlined_call_operand.vmem [shape: bf16[32,32], index: 3, kind: input, shape index: {}]
  %s4 = inlined_call_operand.vmem [shape: bf16[32,32], index: 4, kind: input, shape index: {}]
  %s5 = inlined_call_operand.vmem [shape: bf16[32,64], index: 5, kind: input, shape index: {}]
  %s6 = inlined_call_operand.vmem [shape: bf16[64,32], index: 6, kind: input, shape index: {}]
  %s7 = inlined_call_operand.vmem [shape: bf16[64,16], index: 7, kind: input, shape index: {}]
  %s8 = inlined_call_operand.vmem [shape: f32[16,64], index: 8, kind: input, shape index: {}]
  %s9 = inlined_call_operand.vmem [shape: f32[64,32], index: 9, kind: input, shape index: {}]
  %s10 = inlined_call_operand.vmem [shape: f32[16,64], index: 10, kind: input, shape index: {}]
  %s11 = inlined_call_operand.hbm [shape: f32[16,32], index: 11, kind: output, shape index: {}]
  %s12 = sld [smem:[#allocation0]]
  $region54: #{tpu_custom_call.1} parent=0
    _
  %s14 = ssub.s32 1, %s12
  %s15 = scalar_select 0, %s14, %s12
  $region1: #{tpu_custom_call.1} parent=0
    #allocation2 [shape = 'u8[8192]{0}', space=vmem, size = 0x2000, scoped, tag = 'output window, operand 0, single buffered']
    #allocation3 [shape = 's32[1]{0}', space=sflag, size = 0x4, scoped, tag = 'scoped memory for tpu_custom_call.1']
    %16 = vsyncpa [#allocation3], 0
    // Predicated region
    $region2: #{tpu_custom_call.1} parent=1 // pred_check
      _
    $region3: #{tpu_custom_call.1} parent=1 // pred_check_branch
      %18 = sbr.rel (0) target = $region5
    $region4: #{tpu_custom_call.1} parent=1 // pred_region
      _
    $region5: #{tpu_custom_call.1} parent=1 // pred_fallthru
      _
    // Predicated region
    $region6: #{tpu_custom_call.1} parent=1 // pred_check
      _
    $region7: #{tpu_custom_call.1} parent=1 // pred_check_branch
      %20 = sbr.rel (0) target = $region9
    $region8: #{tpu_custom_call.1} parent=1 // pred_region
      _
    $region9: #{tpu_custom_call.1} parent=1 // pred_fallthru
      _
    // Predicated region
    $region10: #{tpu_custom_call.1} parent=1 // pred_check
      _
    $region11: #{tpu_custom_call.1} parent=1 // pred_check_branch
      %22 = sbr.rel (0) target = $region13
    $region12: #{tpu_custom_call.1} parent=1 // pred_region
      _
    $region13: #{tpu_custom_call.1} parent=1 // pred_fallthru
      _
    // Predicated region
    $region14: #{tpu_custom_call.1} parent=1 // pred_check
      _
    $region15: #{tpu_custom_call.1} parent=1 // pred_check_branch
      %24 = sbr.rel (0) target = $region17
    $region16: #{tpu_custom_call.1} parent=1 // pred_region
      _
    $region17: #{tpu_custom_call.1} parent=1 // pred_fallthru
      _
    // Predicated region
    $region18: #{tpu_custom_call.1} parent=1 // pred_check
      _
    $region19: #{tpu_custom_call.1} parent=1 // pred_check_branch
      %26 = sbr.rel (0) target = $region21
    $region20: #{tpu_custom_call.1} parent=1 // pred_region
      _
    $region21: #{tpu_custom_call.1} parent=1 // pred_fallthru
      _
    // Predicated region
    $region22: #{tpu_custom_call.1} parent=1 // pred_check
      _
    $region23: #{tpu_custom_call.1} parent=1 // pred_check_branch
      %28 = sbr.rel (0) target = $region25
    $region24: #{tpu_custom_call.1} parent=1 // pred_region
      _
    $region25: #{tpu_custom_call.1} parent=1 // pred_fallthru
      _
    // Predicated region
    $region26: #{tpu_custom_call.1} parent=1 // pred_check
      _
    $region27: #{tpu_custom_call.1} parent=1 // pred_check_branch
      %30 = sbr.rel (0) target = $region29
    $region28: #{tpu_custom_call.1} parent=1 // pred_region
      _
    $region29: #{tpu_custom_call.1} parent=1 // pred_fallthru
      _
    // Predicated region
    $region30: #{tpu_custom_call.1} parent=1 // pred_check
      _
    $region31: #{tpu_custom_call.1} parent=1 // pred_check_branch
      %32 = sbr.rel (0) target = $region33
    $region32: #{tpu_custom_call.1} parent=1 // pred_region
      _
    $region33: #{tpu_custom_call.1} parent=1 // pred_fallthru
      _
    // Predicated region
    $region34: #{tpu_custom_call.1} parent=1 // pred_check
      _
    $region35: #{tpu_custom_call.1} parent=1 // pred_check_branch
      %34 = sbr.rel (0) target = $region37
    $region36: #{tpu_custom_call.1} parent=1 // pred_region
      _
    $region37: #{tpu_custom_call.1} parent=1 // pred_fallthru
      _
    // Predicated region
    $region38: #{tpu_custom_call.1} parent=1 // pred_check
      _
    $region39: #{tpu_custom_call.1} parent=1 // pred_check_branch
      %36 = sbr.rel (0) target = $region41
    $region40: #{tpu_custom_call.1} parent=1 // pred_region
      _
    $region41: #{tpu_custom_call.1} parent=1 // pred_fallthru
      _
    // Predicated region
    $region42: #{tpu_custom_call.1} parent=1 // pred_check
      _
    $region43: #{tpu_custom_call.1} parent=1 // pred_check_branch
      %38 = sbr.rel (0) target = $region45
    $region44: #{tpu_custom_call.1} parent=1 // pred_region
      _
    $region45: #{tpu_custom_call.1} parent=1 // pred_fallthru
      _
    %v40 = vld [vmem:[%s0] sm:$0xff]
    %v41 = vld [vmem:[%s0 + $0x8] sm:$0xff]
    %v42 = vld [vmem:[%s1] sm:$0xff]
    %v43 = vld [vmem:[%s1 + $0x8] sm:$0xff]
    %v44 = vadd.f32 %v40, %v42
    %v45 = vadd.f32 %v41, %v43
    %v46 = vld [vmem:[%s8] sm:$0xff]
    %v47 = vld [vmem:[%s8 + $0x8] sm:$0xff]
    %v48 = vld [vmem:[%s9] sm:$0xff]
    %v49 = vld [vmem:[%s9 + $0x8] sm:$0xff]
    %v50 = vld [vmem:[%s9 + $0x10] sm:$0xff]
    %v51 = vld [vmem:[%s9 + $0x18] sm:$0xff]
    %v52 = vld [vmem:[%s9 + $0x20] sm:$0xff]
    %v53 = vld [vmem:[%s9 + $0x28] sm:$0xff]
    %v54 = vld [vmem:[%s9 + $0x30] sm:$0xff]
    %v55 = vld [vmem:[%s9 + $0x38] sm:$0xff]
    %v56 = vld [vmem:[%s7] sm:$0xf]
    %v57 = vld [vmem:[%s7 + $0x4] sm:$0xf]
    %v58 = vld [vmem:[%s7 + $0x8] sm:$0xf]
    %v59 = vld [vmem:[%s7 + $0xc] sm:$0xf]
    %v60 = vld [vmem:[%s7 + $0x10] sm:$0xf]
    %v61 = vld [vmem:[%s7 + $0x14] sm:$0xf]
    %v62 = vld [vmem:[%s7 + $0x18] sm:$0xf]
    %v63 = vld [vmem:[%s7 + $0x1c] sm:$0xf]
    %v64 = vpack.c.bf16 %v45, %v44
    %v65 = vld [vmem:[%s2] sm:$0xf]
    %v66 = vld [vmem:[%s2 + $0x4] sm:$0xf]
    %v67 = vld [vmem:[%s2 + $0x8] sm:$0xf]
    %v68 = vld [vmem:[%s2 + $0xc] sm:$0xf]
    %v69 = vperm.slane %v46, 0
    %v74 = vunpack.c.l.b16 %v65
    %v75 = vunpack.c.l.b16 %v66
    %v76 = vunpack.c.l.b16 %v67
    %v77 = vunpack.c.l.b16 %v68
    %v78 = vpack.c.b16 %v75, %v74
    %v79 = vpack.c.b16 %v77, %v76
    %vm82 = vcmask 261120
    %v84 = vsel %vm82, %v64, 0
    %86 = vmatpush.bf16.msra.mxu0 0
    %87 = vmatpush.bf16.msra.mxu0 0
    %88 = vmatpush.bf16.msra.mxu0 0
    %89 = vmatpush.bf16.msra.mxu0 0
    %90 = vmatpush.bf16.msra.mxu0 0
    %91 = vmatpush.bf16.msra.mxu0 0
    %92 = vmatpush.bf16.msra.mxu0 %v79
    %93 = vmatpush.bf16.msra.mxu0 %v78
    %94 = vmatmul.bf16.gmra.mxu0 %v84
    %v95 = vpop.f32.mrf.mxu0
    %v96 = vadd.f32 %v69, %v95
    %v97 = vpop.f32.mrf.mxu0
    %v98 = vadd.f32 %v69, %v97
    %99 = vdwg.mxu0
    %v100 = vpack.c.bf16 %v41, %v40
    %v101 = vld [vmem:[%s3] sm:$0xf]
    %v102 = vld [vmem:[%s3 + $0x4] sm:$0xf]
    %v103 = vld [vmem:[%s3 + $0x8] sm:$0xf]
    %v104 = vld [vmem:[%s3 + $0xc] sm:$0xf]
    %v105 = vperm.slane %v46, 1
    %v110 = vunpack.c.l.b16 %v101
    %v111 = vunpack.c.l.b16 %v102
    %v112 = vunpack.c.l.b16 %v103
    %v113 = vunpack.c.l.b16 %v104
    %v114 = vpack.c.b16 %v111, %v110
    %v115 = vpack.c.b16 %v113, %v112
    %v119 = vsel %vm82, %v100, 0
    %121 = vmatpush.bf16.msra.mxu0 0
    %122 = vmatpush.bf16.msra.mxu0 0
    %123 = vmatpush.bf16.msra.mxu0 0
    %124 = vmatpush.bf16.msra.mxu0 0
    %125 = vmatpush.bf16.msra.mxu0 0
    %126 = vmatpush.bf16.msra.mxu0 0
    %127 = vmatpush.bf16.msra.mxu0 %v115
    %128 = vmatpush.bf16.msra.mxu0 %v114
    %129 = vmatmul.bf16.gmra.mxu0 %v119
    %v130 = vpop.f32.mrf.mxu0
    %v131 = vadd.f32 %v105, %v130
    %v132 = vpop.f32.mrf.mxu0
    %v133 = vadd.f32 %v105, %v132
    %134 = vdwg.mxu0
    %v135 = vpack.c.bf16 %v98, %v96
    %v144 = vunpack.c.l.b16 %v56
    %v145 = vunpack.c.l.b16 %v57
    %v146 = vunpack.c.l.b16 %v58
    %v147 = vunpack.c.l.b16 %v59
    %v148 = vunpack.c.l.b16 %v60
    %v149 = vunpack.c.l.b16 %v61
    %v150 = vunpack.c.l.b16 %v62
    %v151 = vunpack.c.l.b16 %v63
    %v152 = vpack.c.b16 %v145, %v144
    %v153 = vpack.c.b16 %v147, %v146
    %v154 = vpack.c.b16 %v149, %v148
    %v155 = vpack.c.b16 %v151, %v150
    %157 = vrot.lane.b32.xlu0 %v135, 96
    %v158 = vpop.permute.xlu0 %157
    %vm160 = vcmask 130048
    %v162 = vsel %vm160, %v152, 0
    %v165 = vsel %vm160, %v153, 0
    %v168 = vsel %vm160, %v154, 0
    %v171 = vsel %vm160, %v155, 0
    %173 = vmatpush.bf16.msra.mxu0 0
    %174 = vmatpush.bf16.msra.mxu0 0
    %175 = vmatpush.bf16.msra.mxu0 0
    %176 = vmatpush.bf16.msra.mxu0 0
    %177 = vmatpush.bf16.msra.mxu0 0
    %178 = vmatpush.bf16.msra.mxu0 0
    %179 = vmatpush.bf16.msra.mxu0 0
    %180 = vmatpush.bf16.msra.mxu0 %v158
    %181 = vmatmul.bf16.gmra.mxu0 %v162
    %v182 = vpop.f32.mrf.mxu0
    %v183 = vadd.f32 0.0, %v182
    %v184 = vpop.f32.mrf.mxu0
    %v185 = vadd.f32 0.0, %v184
    %186 = vmatmul.bf16.gmra.mxu0 %v165
    %v187 = vpop.f32.mrf.mxu0
    %v188 = vadd.f32 0.0, %v187
    %v189 = vpop.f32.mrf.mxu0
    %v190 = vadd.f32 0.0, %v189
    %191 = vmatmul.bf16.gmra.mxu0 %v168
    %v192 = vpop.f32.mrf.mxu0
    %v193 = vadd.f32 0.0, %v192
    %v194 = vpop.f32.mrf.mxu0
    %v195 = vadd.f32 0.0, %v194
    %196 = vmatmul.bf16.gmra.mxu0 %v171
    %v197 = vpop.f32.mrf.mxu0
    %v198 = vadd.f32 0.0, %v197
    %v199 = vpop.f32.mrf.mxu0
    %v200 = vadd.f32 0.0, %v199
    %201 = vdwg.mxu0
    %v202 = vmul.f32 %v183, %v48
    %v203 = vmul.f32 %v185, %v49
    %v204 = vmul.f32 %v188, %v50
    %v205 = vmul.f32 %v190, %v51
    %v206 = vmul.f32 %v193, %v52
    %v207 = vmul.f32 %v195, %v53
    %v208 = vmul.f32 %v198, %v54
    %v209 = vmul.f32 %v200, %v55
    %v210 = vpack.c.bf16 %v133, %v131
    %211 = vmatpush.bf16.msra.mxu0 0
    %212 = vmatpush.bf16.msra.mxu0 0
    %213 = vmatpush.bf16.msra.mxu0 0
    %214 = vmatpush.bf16.msra.mxu0 0
    %215 = vmatpush.bf16.msra.mxu0 0
    %216 = vmatpush.bf16.msra.mxu0 0
    %217 = vmatpush.bf16.msra.mxu0 0
    %218 = vmatpush.bf16.msra.mxu0 %v210
    %219 = vmatmul.bf16.gmra.mxu0 %v162
    %v220 = vpop.f32.mrf.mxu0
    %v221 = vadd.f32 0.0, %v220
    %v222 = vpop.f32.mrf.mxu0
    %v223 = vadd.f32 0.0, %v222
    %224 = vmatmul.bf16.gmra.mxu0 %v165
    %v225 = vpop.f32.mrf.mxu0
    %v226 = vadd.f32 0.0, %v225
    %v227 = vpop.f32.mrf.mxu0
    %v228 = vadd.f32 0.0, %v227
    %229 = vmatmul.bf16.gmra.mxu0 %v168
    %v230 = vpop.f32.mrf.mxu0
    %v231 = vadd.f32 0.0, %v230
    %v232 = vpop.f32.mrf.mxu0
    %v233 = vadd.f32 0.0, %v232
    %234 = vmatmul.bf16.gmra.mxu0 %v171
    %v235 = vpop.f32.mrf.mxu0
    %v236 = vadd.f32 0.0, %v235
    %v237 = vpop.f32.mrf.mxu0
    %v238 = vadd.f32 0.0, %v237
    %239 = vdwg.mxu0
    %v240 = vmul.f32 %v221, %v48
    %v241 = vmul.f32 %v223, %v49
    %v242 = vmul.f32 %v226, %v50
    %v243 = vmul.f32 %v228, %v51
    %v244 = vmul.f32 %v231, %v52
    %v245 = vmul.f32 %v233, %v53
    %v246 = vmul.f32 %v236, %v54
    %v247 = vmul.f32 %v238, %v55
    %v248 = vpack.c.bf16 %v203, %v202
    %v249 = vpack.c.bf16 %v205, %v204
    %v250 = vpack.c.bf16 %v207, %v206
    %v251 = vpack.c.bf16 %v209, %v208
    %v252 = vld [vmem:[%s10] sm:$0xff]
    %v253 = vld [vmem:[%s10 + $0x8] sm:$0xff]
    %v255 = vsel %vm82, %v135, 0
    %v258 = vsel %vm82, %v248, 0
    %v261 = vsel %vm82, %v249, 0
    %v264 = vsel %vm82, %v250, 0
    %v267 = vsel %vm82, %v251, 0
    %269 = vmatpush.bf16.xpose.msra.mxu0 0
    %270 = vmatpush.bf16.xpose.msra.mxu0 0
    %271 = vmatpush.bf16.xpose.msra.mxu0 0
    %272 = vmatpush.bf16.xpose.msra.mxu0 0
    %273 = vmatpush.bf16.xpose.msra.mxu0 %v267
    %274 = vmatpush.bf16.xpose.msra.mxu0 %v264
    %275 = vmatpush.bf16.xpose.msra.mxu0 %v261
    %276 = vmatpush.bf16.xpose.msra.mxu0 %v258
    %277 = vmatmul.bf16.gmra.mxu0 %v255
    %v278 = vpop.f32.mrf.mxu0
    %v279 = vadd.f32 %v252, %v278
    %v280 = vpop.f32.mrf.mxu0
    %v281 = vadd.f32 %v253, %v280
    %282 = vdwg.mxu0
    %vm283 = vcmask 523264
    %v284 = vsel %vm283, %v279, -inf
    %285 = vmax.xlane.f32.xlu0 %v284
    %v286 = vpop.xlane.xlu0 %285
    %v287 = vsel %vm283, %v281, -inf
    %288 = vmax.xlane.f32.xlu0 %v287
    %v289 = vpop.xlane.xlu0 %288
    %v290 = vsub.f32 %v279, %v286
    %v291 = vsub.f32 %v281, %v289
    %v292 = vmul.f32 %v290, 1.442695
    %v293 = vpow.pop %v292
    %v294 = vmul.f32 %v291, 1.442695
    %v295 = vpow.pop %v294
    %v296 = vpack.c.bf16 %v295, %v293
    %v297 = vpack.c.bf16 %v241, %v240
    %v298 = vpack.c.bf16 %v243, %v242
    %v299 = vpack.c.bf16 %v245, %v244
    %v300 = vpack.c.bf16 %v247, %v246
    %v302 = vsel %vm283, %v296, 0
    %304 = vmatpush.bf16.msra.mxu0 0
    %305 = vmatpush.bf16.msra.mxu0 0
    %306 = vmatpush.bf16.msra.mxu0 0
    %307 = vmatpush.bf16.msra.mxu0 0
    %308 = vmatpush.bf16.msra.mxu0 %v300
    %309 = vmatpush.bf16.msra.mxu0 %v299
    %310 = vmatpush.bf16.msra.mxu0 %v298
    %311 = vmatpush.bf16.msra.mxu0 %v297
    %312 = vmatmul.bf16.gmra.mxu0 %v302
    %v313 = vpop.f32.mrf.mxu0
    %v314 = vadd.f32 0.0, %v313
    %v315 = vpop.f32.mrf.mxu0
    %v316 = vadd.f32 0.0, %v315
    %317 = vdwg.mxu0
    %v319 = vsel %vm283, %v293, 0
    %v322 = vsel %vm283, %v295, 0
    %324 = vmatpush.msra.mxu0 0.0
    %325 = vmatpush.msra.mxu0 0.0
    %326 = vmatpush.msra.mxu0 0.0
    %327 = vmatpush.msra.mxu0 0.0
    %328 = vmatpush.msra.mxu0 0.0
    %329 = vmatpush.msra.mxu0 0.0
    %330 = vmatpush.msra.mxu0 0.0
    %331 = vmatpush.msra.mxu0 0.0
    %332 = vmatpush.msra.mxu0 %v55
    %333 = vmatpush.msra.mxu0 %v54
    %334 = vmatpush.msra.mxu0 %v53
    %335 = vmatpush.msra.mxu0 %v52
    %336 = vmatpush.msra.mxu0 %v51
    %337 = vmatpush.msra.mxu0 %v50
    %338 = vmatpush.msra.mxu0 %v49
    %339 = vmatpush.msra.mxu0 %v48
    %340 = vmatmul.f32.gmra.mxu0 %v319
    %v341 = vpop.f32.mrf.mxu0
    %v342 = vadd.f32 0.0, %v341
    %343 = vmatmul.f32.gmra.mxu0 %v322
    %v344 = vpop.f32.mrf.mxu0
    %v345 = vadd.f32 0.0, %v344
    %346 = vdwg.mxu0
    %v347 = vrcp.pop %v342
    %v348 = vrcp.pop %v345
    %v349 = vmul.f32 %v314, %v347
    %v350 = vmul.f32 %v316, %v348
    %v351 = vpack.c.bf16 %v350, %v349
    %v352 = vld [vmem:[%s4] sm:$0xf]
    %v353 = vld [vmem:[%s4 + $0x4] sm:$0xf]
    %v354 = vld [vmem:[%s4 + $0x8] sm:$0xf]
    %v355 = vld [vmem:[%s4 + $0xc] sm:$0xf]
    %v356 = vperm.slane %v46, 2
    %v361 = vunpack.c.l.b16 %v352
    %v362 = vunpack.c.l.b16 %v353
    %v363 = vunpack.c.l.b16 %v354
    %v364 = vunpack.c.l.b16 %v355
    %v365 = vpack.c.b16 %v362, %v361
    %v366 = vpack.c.b16 %v364, %v363
    %v370 = vsel %vm82, %v351, 0
    %372 = vmatpush.bf16.msra.mxu0 0
    %373 = vmatpush.bf16.msra.mxu0 0
    %374 = vmatpush.bf16.msra.mxu0 0
    %375 = vmatpush.bf16.msra.mxu0 0
    %376 = vmatpush.bf16.msra.mxu0 0
    %377 = vmatpush.bf16.msra.mxu0 0
    %378 = vmatpush.bf16.msra.mxu0 %v366
    %379 = vmatpush.bf16.msra.mxu0 %v365
    %380 = vmatmul.bf16.gmra.mxu0 %v370
    %v381 = vpop.f32.mrf.mxu0
    %v382 = vadd.f32 %v356, %v381
    %v383 = vpop.f32.mrf.mxu0
    %v384 = vadd.f32 %v356, %v383
    %385 = vdwg.mxu0
    %v386 = vadd.f32 %v40, %v382
    %v387 = vadd.f32 %v41, %v384
    %v388 = vsel %vm82, %v386, 0.0
    %389 = vadd.xlane.f32.xlu0 %v388
    %v390 = vpop.xlane.xlu0 %389
    %v391 = vsel %vm82, %v387, 0.0
    %392 = vadd.xlane.f32.xlu0 %v391
    %v393 = vpop.xlane.xlu0 %392
    %v394 = vrcp.pop 32.0
    %v395 = vmul.f32 32.0, %v394
    %v396 = vsub.f32 1.0, %v395
    %v397 = vmul.f32 %v394, %v396
    %v398 = vadd.f32 %v394, %v397
    %vm399 = vweird.f32 %v394
    %v400 = vsel %vm399, %v394, %v398
    %v401 = vmul.f32 %v390, %v400
    %v402 = vmul.f32 %v393, %v400
    %v403 = vmul.f32 %v386, %v386
    %v404 = vmul.f32 %v387, %v387
    %v405 = vsel %vm82, %v403, 0.0
    %406 = vadd.xlane.f32.xlu0 %v405
    %v407 = vpop.xlane.xlu0 %406
    %v408 = vsel %vm82, %v404, 0.0
    %409 = vadd.xlane.f32.xlu0 %v408
    %v410 = vpop.xlane.xlu0 %409
    %v411 = vmul.f32 %v407, %v400
    %v412 = vmul.f32 %v410, %v400
    %v413 = vmul.f32 %v401, %v401
    %v414 = vmul.f32 %v402, %v402
    %v415 = vsub.f32 %v411, %v413
    %v416 = vsub.f32 %v412, %v414
    %v417 = vsub.f32 %v386, %v401
    %v418 = vsub.f32 %v387, %v402
    %v419 = vadd.f32 %v415, 1e-05
    %v420 = vadd.f32 %v416, 1e-05
    %v421 = vrsqrt.pop %v419
    %v422 = vmul.f32 %v421, %v419
    %v423 = vmul.f32 %v422, %v421
    %v424 = vmul.f32 0.5, %v423
    %v425 = vsub.f32 1.5, %v424
    %v426 = vmul.f32 %v421, %v425
    %vm427 = vweird.f32 %v419
    %vm428 = vweird.f32 %v421
    %vm429 = vmor %vm427, %vm428
    %v430 = vsel %vm429, %v421, %v426
    %v431 = vrsqrt.pop %v420
    %v432 = vmul.f32 %v431, %v420
    %v433 = vmul.f32 %v432, %v431
    %v434 = vmul.f32 0.5, %v433
    %v435 = vsub.f32 1.5, %v434
    %v436 = vmul.f32 %v431, %v435
    %vm437 = vweird.f32 %v420
    %vm438 = vweird.f32 %v431
    %vm439 = vmor %vm437, %vm438
    %v440 = vsel %vm439, %v431, %v436
    %v441 = vmul.f32 %v417, %v430
    %v442 = vmul.f32 %v418, %v440
    %v443 = vperm.slane %v46, 5
    %v444 = vmul.f32 %v441, %v443
    %v445 = vmul.f32 %v442, %v443
    %v446 = vperm.slane %v46, 6
    %v447 = vadd.f32 %v444, %v446
    %v448 = vadd.f32 %v445, %v446
    %v449 = vpack.c.bf16 %v448, %v447
    %v450 = vld [vmem:[%s5] sm:$0xf]
    %v451 = vld [vmem:[%s5 + $0x4] sm:$0xf]
    %v452 = vld [vmem:[%s5 + $0x8] sm:$0xf]
    %v453 = vld [vmem:[%s5 + $0xc] sm:$0xf]
    %v454 = vperm.slane %v46, 3
    %v459 = vunpack.c.l.b16 %v450
    %v460 = vunpack.c.l.b16 %v451
    %v461 = vunpack.c.l.b16 %v452
    %v462 = vunpack.c.l.b16 %v453
    %v463 = vpack.c.b16 %v460, %v459
    %v464 = vpack.c.b16 %v462, %v461
    %v468 = vsel %vm82, %v449, 0
    %470 = vmatpush.bf16.msra.mxu0 0
    %471 = vmatpush.bf16.msra.mxu0 0
    %472 = vmatpush.bf16.msra.mxu0 0
    %473 = vmatpush.bf16.msra.mxu0 0
    %474 = vmatpush.bf16.msra.mxu0 0
    %475 = vmatpush.bf16.msra.mxu0 0
    %476 = vmatpush.bf16.msra.mxu0 %v464
    %477 = vmatpush.bf16.msra.mxu0 %v463
    %478 = vmatmul.bf16.gmra.mxu0 %v468
    %v479 = vpop.f32.mrf.mxu0
    %v480 = vadd.f32 %v454, %v479
    %v481 = vpop.f32.mrf.mxu0
    %v482 = vadd.f32 %v454, %v481
    %483 = vdwg.mxu0
    %v484 = vmax.f32 %v480, 0.0
    %v485 = vmax.f32 %v482, 0.0
    %v486 = vpack.c.bf16 %v485, %v484
    %v487 = vld [vmem:[%s6] sm:$0xf]
    %v488 = vld [vmem:[%s6 + $0x4] sm:$0xf]
    %v489 = vld [vmem:[%s6 + $0x8] sm:$0xf]
    %v490 = vld [vmem:[%s6 + $0xc] sm:$0xf]
    %v491 = vld [vmem:[%s6 + $0x10] sm:$0xf]
    %v492 = vld [vmem:[%s6 + $0x14] sm:$0xf]
    %v493 = vld [vmem:[%s6 + $0x18] sm:$0xf]
    %v494 = vld [vmem:[%s6 + $0x1c] sm:$0xf]
    %v495 = vperm.slane %v46, 4
    %v504 = vunpack.c.l.b16 %v487
    %v505 = vunpack.c.l.b16 %v488
    %v506 = vunpack.c.l.b16 %v489
    %v507 = vunpack.c.l.b16 %v490
    %v508 = vunpack.c.l.b16 %v491
    %v509 = vunpack.c.l.b16 %v492
    %v510 = vunpack.c.l.b16 %v493
    %v511 = vunpack.c.l.b16 %v494
    %v512 = vpack.c.b16 %v505, %v504
    %v513 = vpack.c.b16 %v507, %v506
    %v514 = vpack.c.b16 %v509, %v508
    %v515 = vpack.c.b16 %v511, %v510
    %v521 = vsel %vm283, %v486, 0
    %523 = vmatpush.bf16.msra.mxu0 0
    %524 = vmatpush.bf16.msra.mxu0 0
    %525 = vmatpush.bf16.msra.mxu0 0
    %526 = vmatpush.bf16.msra.mxu0 0
    %527 = vmatpush.bf16.msra.mxu0 %v515
    %528 = vmatpush.bf16.msra.mxu0 %v514
    %529 = vmatpush.bf16.msra.mxu0 %v513
    %530 = vmatpush.bf16.msra.mxu0 %v512
    %531 = vmatmul.bf16.gmra.mxu0 %v521
    %v532 = vpop.f32.mrf.mxu0
    %v533 = vadd.f32 %v495, %v532
    %v534 = vpop.f32.mrf.mxu0
    %v535 = vadd.f32 %v495, %v534
    %536 = vdwg.mxu0
    %v537 = vadd.f32 %v447, %v533
    %v538 = vadd.f32 %v448, %v535
    %v539 = vsel %vm82, %v537, 0.0
    %540 = vadd.xlane.f32.xlu0 %v539
    %v541 = vpop.xlane.xlu0 %540
    %v542 = vsel %vm82, %v538, 0.0
    %543 = vadd.xlane.f32.xlu0 %v542
    %v544 = vpop.xlane.xlu0 %543
    %v545 = vmul.f32 %v541, %v400
    %v546 = vmul.f32 %v544, %v400
    %v547 = vmul.f32 %v537, %v537
    %v548 = vmul.f32 %v538, %v538
    %v549 = vsel %vm82, %v547, 0.0
    %550 = vadd.xlane.f32.xlu0 %v549
    %v551 = vpop.xlane.xlu0 %550
    %v552 = vsel %vm82, %v548, 0.0
    %553 = vadd.xlane.f32.xlu0 %v552
    %v554 = vpop.xlane.xlu0 %553
    %v555 = vmul.f32 %v551, %v400
    %v556 = vmul.f32 %v554, %v400
    %v557 = vmul.f32 %v545, %v545
    %v558 = vmul.f32 %v546, %v546
    %v559 = vsub.f32 %v555, %v557
    %v560 = vsub.f32 %v556, %v558
    %v561 = vsub.f32 %v537, %v545
    %v562 = vsub.f32 %v538, %v546
    %v563 = vadd.f32 %v559, 1e-05
    %v564 = vadd.f32 %v560, 1e-05
    %v565 = vrsqrt.pop %v563
    %v566 = vmul.f32 %v565, %v563
    %v567 = vmul.f32 %v566, %v565
    %v568 = vmul.f32 0.5, %v567
    %v569 = vsub.f32 1.5, %v568
    %v570 = vmul.f32 %v565, %v569
    %vm571 = vweird.f32 %v563
    %vm572 = vweird.f32 %v565
    %vm573 = vmor %vm571, %vm572
    %v574 = vsel %vm573, %v565, %v570
    %v575 = vrsqrt.pop %v564
    %v576 = vmul.f32 %v575, %v564
    %v577 = vmul.f32 %v576, %v575
    %v578 = vmul.f32 0.5, %v577
    %v579 = vsub.f32 1.5, %v578
    %v580 = vmul.f32 %v575, %v579
    %vm581 = vweird.f32 %v564
    %vm582 = vweird.f32 %v575
    %vm583 = vmor %vm581, %vm582
    %v584 = vsel %vm583, %v575, %v580
    %v585 = vmul.f32 %v561, %v574
    %v586 = vmul.f32 %v562, %v584
    %v587 = vperm.slane %v46, 7
    %v588 = vmul.f32 %v585, %v587
    %v589 = vmul.f32 %v586, %v587
    %v590 = vperm.slane %v47, 0
    %v591 = vadd.f32 %v588, %v590
    %v592 = vadd.f32 %v589, %v590
    %593 = vst.msk [vmem:[#allocation2] sm:$0xff] %vm82, %v591
    %594 = vst.msk [vmem:[#allocation2 + $0x8] sm:$0xff] %vm82, %v592
    // Predicated region
    $region46: #{tpu_custom_call.1} parent=1 // pred_check
      _
    $region47: #{tpu_custom_call.1} parent=1 // pred_check_branch
      %596 = sbr.rel (0) target = $region49
    $region48: #{tpu_custom_call.1} parent=1 // pred_region
      %598 = vsyncadd [#allocation3], 0
      %s599 = sshll.u32 [#allocation2], 4
      %s600 = int_to_ptr.vmem [resolvable:$true] %s599
      %s601 = sshll.u32 %s11, 4
      %s602 = int_to_ptr.hbm [resolvable:$true] %s601
      %607 = dma.vmem_to_hbm [thread:$0]  %s600, 256, %s602, [#allocation3], 128, 128, 8
    $region49: #{tpu_custom_call.1} parent=1 // pred_fallthru
      _
    // Predicated region
    $region50: #{tpu_custom_call.1} parent=1 // pred_check
      _
    $region51: #{tpu_custom_call.1} parent=1 // pred_check_branch
      %609 = sbr.rel (0) target = $region53
    $region52: #{tpu_custom_call.1} parent=1 // pred_region
      %611 = dma.done [#allocation3], 256
    $region53: #{tpu_custom_call.1} parent=1 // pred_fallthru
      _
    %612 = vsyncpa [#allocation3], 1

</llo_original>
